<compile_context>
chip_gen: v5e
topology: v5e:2x2
jax: 0.10.0
libtpu: 0.0.40
codegen_flags: <defaults>
</compile_context>

<pallas_src>
import jax
import jax.numpy as jnp
from jax.experimental import pallas as pl
from jax.experimental.pallas import tpu as pltpu


def _round_up(x, m):
    return (x + m - 1) // m * m


def _mlp_kernel(x_ref, w1_ref, b1_ref, w2_ref, b2_ref, o_ref):
    # Cast the x tile to bf16 inside the kernel (no extra HBM pass in the wrapper).
    x_bf = x_ref[...].astype(jnp.bfloat16)
    # hidden = relu(x @ W1 + b1)   -- bf16 matmul, f32 accumulation / bias / relu
    h = jnp.dot(x_bf, w1_ref[...], preferred_element_type=jnp.float32)
    h = jnp.maximum(h + b1_ref[...], 0.0)
    # dropout(p=0.0) == identity
    # out = hidden @ W2 + b2      -- unpadded (TB, D_out) store
    out = jnp.dot(h.astype(jnp.bfloat16), w2_ref[...],
                  preferred_element_type=jnp.float32)
    o_ref[...] = (out + b2_ref[...]).astype(o_ref.dtype)


def prepare_params(w1, b1, w2, b2):
    """One-time padding/casting of weights (call once at init, not per forward).

    w1: (D_in, H), b1: (H,) or (1, H), w2: (H, D_out), b2: (D_out,) or (1, D_out).
    Hidden dim is zero-padded to a 128-lane multiple; padded hidden lanes are
    exactly zero (relu(0)=0) and W2's padded rows are zero, so results are exact.
    """
    D_in, H = w1.shape
    H2, D_out = w2.shape
    assert H2 == H
    H_pad = _round_up(H, 128)

    b1 = jnp.asarray(b1, jnp.float32).reshape(1, H)
    b2 = jnp.asarray(b2, jnp.float32).reshape(1, D_out)

    w1_p = jnp.zeros((D_in, H_pad), jnp.bfloat16).at[:, :H].set(w1.astype(jnp.bfloat16))
    b1_p = jnp.zeros((1, H_pad), jnp.float32).at[:, :H].set(b1)
    w2_p = jnp.zeros((H_pad, D_out), jnp.bfloat16).at[:H, :].set(w2.astype(jnp.bfloat16))
    b2_p = b2
    return w1_p, b1_p, w2_p, b2_p


def mlp_forward(x, w1_p, b1_p, w2_p, b2_p, *, block_batch=1024):
    """x: (B, D_in) f32.  Prepared params from prepare_params().  Returns (B, D_out) f32."""
    B, D_in = x.shape
    H_pad = w1_p.shape[1]
    D_out = w2_p.shape[1]

    # Batch tile: multiple of 8 sublanes (f32), no larger than the (8-rounded) batch,
    # and capped so that large batches give several grid steps (pipelining +
    # v7x 2-TensorCore sharding of the "parallel" axis).
    TB = min(block_batch,
             _round_up(B, 8),
             max(256, _round_up(pl.cdiv(B, 8), 8)))
    grid = (pl.cdiv(B, TB),)   # trailing partial block is masked by Pallas

    # Generation-aware-ish VMEM budget: double-buffered x/out tiles, resident
    # weights/biases (x2 for default double-buffering), hidden intermediate, slack.
    vmem_bytes = (2 * TB * (D_in * 4 + D_out * 4)
                  + 2 * (D_in * H_pad * 2 + H_pad * D_out * 2 + H_pad * 4 + D_out * 4)
                  + TB * H_pad * 4)
    vmem_limit = int(min(max(2 * vmem_bytes + (4 << 20), 16 << 20), 48 << 20))

    return pl.pallas_call(
        _mlp_kernel,
        out_shape=jax.ShapeDtypeStruct((B, D_out), jnp.float32),
        grid=grid,
        in_specs=[
            pl.BlockSpec((TB, D_in), lambda i: (i, 0)),      # x  (streamed, f32)
            pl.BlockSpec((D_in, H_pad), lambda i: (0, 0)),   # W1 (VMEM-resident, bf16)
            pl.BlockSpec((1, H_pad), lambda i: (0, 0)),      # b1 (VMEM-resident, f32)
            pl.BlockSpec((H_pad, D_out), lambda i: (0, 0)),  # W2 (VMEM-resident, bf16)
            pl.BlockSpec((1, D_out), lambda i: (0, 0)),      # b2 (VMEM-resident, f32)
        ],
        out_specs=pl.BlockSpec((TB, D_out), lambda i: (i, 0)),  # unpadded output
        compiler_params=pltpu.CompilerParams(
            dimension_semantics=("parallel",),
            vmem_limit_bytes=vmem_limit,
        ),
    )(x, w1_p, b1_p, w2_p, b2_p)


def init_params(key, input_size, hidden_size, output_size):
    """Deterministic init mimicking torch.nn.Linear default (U[-1/sqrt(fan_in), +])."""
    k1, k2, k3, k4 = jax.random.split(key, 4)
    bound1 = 1.0 / jnp.sqrt(jnp.float32(input_size))
    bound2 = 1.0 / jnp.sqrt(jnp.float32(hidden_size))
    # Stored transposed relative to PyTorch's (out, in) layout.
    w1 = jax.random.uniform(k1, (input_size, hidden_size), jnp.float32, -bound1, bound1)
    b1 = jax.random.uniform(k2, (hidden_size,), jnp.float32, -bound1, bound1)
    w2 = jax.random.uniform(k3, (hidden_size, output_size), jnp.float32, -bound2, bound2)
    b2 = jax.random.uniform(k4, (output_size,), jnp.float32, -bound2, bound2)
    return w1, b1, w2, b2


def reference_forward(x, w1, b1, w2, b2):
    # Matches the kernel's numerics: bf16 operands, f32 accumulation / bias / relu.
    xb = x.astype(jnp.bfloat16).astype(jnp.float32)
    w1b = w1.astype(jnp.bfloat16).astype(jnp.float32)
    w2b = w2.astype(jnp.bfloat16).astype(jnp.float32)
    h = jnp.maximum(xb @ w1b + b1[None, :], 0.0)
    hb = h.astype(jnp.bfloat16).astype(jnp.float32)
    return hb @ w2b + b2[None, :]


if __name__ == "__main__":
    key = jax.random.PRNGKey(0)
    k_in, k_param = jax.random.split(key)

    batch = 8
    input_size = 16
    hidden_size = 32
    output_size = 4

    x = jax.random.normal(k_in, (batch, input_size), jnp.float32)
    w1, b1, w2, b2 = init_params(k_param, input_size, hidden_size, output_size)

    # One-time param preparation (padding / bf16 cast) outside the hot path.
    params_p = prepare_params(w1, b1, w2, b2)

    out = mlp_forward(x, *params_p)
    out = jax.block_until_ready(out)

    ref = reference_forward(x, w1, b1, w2, b2)
    ref_f32 = jnp.maximum(x @ w1 + b1[None, :], 0.0) @ w2 + b2[None, :]

    assert out.shape == (batch, output_size)
    assert jnp.allclose(out, ref, atol=1e-3, rtol=1e-3)          # vs matching bf16 path
    assert jnp.allclose(out, ref_f32, atol=5e-2, rtol=5e-2)      # sanity vs full-f32 math

    print("KERNEL_OK")
</pallas_src>

<mosaic_0001>
module attributes {stable_mosaic.version = 11 : i64} {
  func.func @_mlp_kernel(%arg0: i32, %arg1: memref<8x16xf32, #tpu.memory_space<vmem>>, %arg2: memref<16x128xbf16, #tpu.memory_space<vmem>>, %arg3: memref<1x128xf32, #tpu.memory_space<vmem>>, %arg4: memref<128x4xbf16, #tpu.memory_space<vmem>>, %arg5: memref<1x4xf32, #tpu.memory_space<vmem>>, %arg6: memref<8x4xf32, #tpu.memory_space<vmem>>) attributes {dimension_semantics = [#tpu.dimension_semantics<parallel>], iteration_bounds = array<i64: 1>, scalar_prefetch = 0 : i64, scratch_operands = 0 : i64, tpu.core_type = #tpu.core_type<tc>, window_params = [{transform_indices = @transform_0, window_bounds = array<i64: 8, 16>}, {pipeline_mode = #tpu.pipeline_mode<synchronous>, transform_indices = @transform_1, window_bounds = array<i64: 16, 128>}, {pipeline_mode = #tpu.pipeline_mode<synchronous>, transform_indices = @transform_2, window_bounds = array<i64: 1, 128>}, {pipeline_mode = #tpu.pipeline_mode<synchronous>, transform_indices = @transform_3, window_bounds = array<i64: 128, 4>}, {pipeline_mode = #tpu.pipeline_mode<synchronous>, transform_indices = @transform_4, window_bounds = array<i64: 1, 4>}, {transform_indices = @transform_5, window_bounds = array<i64: 8, 4>}]} {
    %c0 = arith.constant 0 : index
    %c0_0 = arith.constant 0 : index
    %0 = vector.load %arg1[%c0, %c0_0] : memref<8x16xf32, #tpu.memory_space<vmem>>, vector<8x16xf32>
    %1 = arith.truncf %0 : vector<8x16xf32> to vector<8x16xbf16>
    %c0_1 = arith.constant 0 : index
    %c0_2 = arith.constant 0 : index
    %2 = vector.load %arg2[%c0_1, %c0_2] : memref<16x128xbf16, #tpu.memory_space<vmem>>, vector<16x128xbf16>
    %cst = arith.constant dense<0.000000e+00> : vector<8x128xf32>
    %3 = tpu.matmul %1, %2, %cst {dimension_numbers = #tpu.dot_dimension_numbers<[1], [0], [0], [1], [0, 0, 1, 1], [], []>} : vector<8x16xbf16>, vector<16x128xbf16>, vector<8x128xf32> -> vector<8x128xf32>
    %c0_3 = arith.constant 0 : index
    %c0_4 = arith.constant 0 : index
    %4 = vector.load %arg3[%c0_3, %c0_4] : memref<1x128xf32, #tpu.memory_space<vmem>>, vector<1x128xf32>
    %5 = vector.broadcast %4 : vector<1x128xf32> to vector<8x128xf32>
    %6 = arith.addf %3, %5 : vector<8x128xf32>
    %cst_5 = arith.constant 0.000000e+00 : f32
    %7 = vector.broadcast %cst_5 : f32 to vector<8x128xf32>
    %8 = arith.maximumf %6, %7 : vector<8x128xf32>
    %9 = arith.truncf %8 : vector<8x128xf32> to vector<8x128xbf16>
    %c0_6 = arith.constant 0 : index
    %c0_7 = arith.constant 0 : index
    %10 = vector.load %arg4[%c0_6, %c0_7] : memref<128x4xbf16, #tpu.memory_space<vmem>>, vector<128x4xbf16>
    %cst_8 = arith.constant dense<0.000000e+00> : vector<8x4xf32>
    %11 = tpu.matmul %9, %10, %cst_8 {dimension_numbers = #tpu.dot_dimension_numbers<[1], [0], [0], [1], [0, 0, 1, 1], [], []>} : vector<8x128xbf16>, vector<128x4xbf16>, vector<8x4xf32> -> vector<8x4xf32>
    %c0_9 = arith.constant 0 : index
    %c0_10 = arith.constant 0 : index
    %12 = vector.load %arg5[%c0_9, %c0_10] : memref<1x4xf32, #tpu.memory_space<vmem>>, vector<1x4xf32>
    %13 = vector.broadcast %12 : vector<1x4xf32> to vector<8x4xf32>
    %14 = arith.addf %11, %13 : vector<8x4xf32>
    %c0_11 = arith.constant 0 : index
    %c0_12 = arith.constant 0 : index
    %15 = vector.load %arg6[%c0_11, %c0_12] : memref<8x4xf32, #tpu.memory_space<vmem>>, vector<8x4xf32>
    tpu.vector_store %arg6[%c0_11, %c0_12], %14 {strides = array<i32>} : memref<8x4xf32, #tpu.memory_space<vmem>>, vector<8x4xf32>,
    return
  }
  func.func @transform_0(%arg0: i32) -> (i32, i32) {
    %c0_i32 = arith.constant 0 : i32
    %c0_i32_0 = arith.constant 0 : i32
    return %arg0, %c0_i32 : i32, i32
  }
  func.func @transform_1(%arg0: i32) -> (i32, i32) {
    %c0_i32 = arith.constant 0 : i32
    %c0_i32_0 = arith.constant 0 : i32
    %c0_i32_1 = arith.constant 0 : i32
    return %c0_i32, %c0_i32_0 : i32, i32
  }
  func.func @transform_2(%arg0: i32) -> (i32, i32) {
    %c0_i32 = arith.constant 0 : i32
    %c0_i32_0 = arith.constant 0 : i32
    %c0_i32_1 = arith.constant 0 : i32
    return %c0_i32, %c0_i32_0 : i32, i32
  }
  func.func @transform_3(%arg0: i32) -> (i32, i32) {
    %c0_i32 = arith.constant 0 : i32
    %c0_i32_0 = arith.constant 0 : i32
    %c0_i32_1 = arith.constant 0 : i32
    return %c0_i32, %c0_i32_0 : i32, i32
  }
  func.func @transform_4(%arg0: i32) -> (i32, i32) {
    %c0_i32 = arith.constant 0 : i32
    %c0_i32_0 = arith.constant 0 : i32
    %c0_i32_1 = arith.constant 0 : i32
    return %c0_i32, %c0_i32_0 : i32, i32
  }
  func.func @transform_5(%arg0: i32) -> (i32, i32) {
    %c0_i32 = arith.constant 0 : i32
    %c0_i32_0 = arith.constant 0 : i32
    return %arg0, %c0_i32 : i32, i32
  }
}

</mosaic_0001>

<llo_original>
// kernel: tpu_custom_call.1
$region0: #{tpu_custom_call.1}
  #allocation0 [shape = 'u32[]', space=smem, size = 0x4, offset = 0x4, fixed_abs, tag = 'smem constant byte address 0x4 - core index']
  #allocation1 [shape = 'u32[72,128]{1,0:T(1,128)}', space=vmem, size = 0x9000, scoped, tag = 'internal scratch']
  %s0 = inlined_call_operand.vmem [shape: f32[8,16], index: 0, kind: input, shape index: {}]
  %s1 = inlined_call_operand.vmem [shape: bf16[16,128], index: 1, kind: input, shape index: {}]
  %s2 = inlined_call_operand.vmem [shape: f32[1,128], index: 2, kind: input, shape index: {}]
  %s3 = inlined_call_operand.vmem [shape: bf16[128,4], index: 3, kind: input, shape index: {}]
  %s4 = inlined_call_operand.vmem [shape: f32[1,4], index: 4, kind: input, shape index: {}]
  %s5 = inlined_call_operand.vmem [shape: f32[8,4], index: 5, kind: output, shape index: {}]
  %s6 = sld [smem:[#allocation0]]
  $region30: #{tpu_custom_call.1} parent=0
    _
  %s8 = ssub.s32 1, %s6
  %s9 = scalar_select 0, %s8, %s6
  // Predicated region
  $region2: #{tpu_custom_call.1} parent=0 // pred_check
    _
  $region3: #{tpu_custom_call.1} parent=0 // pred_check_branch
    %11 = sbr.rel (0) target = $region5
  $region4: #{tpu_custom_call.1} parent=0 // pred_region
    _
  $region5: #{tpu_custom_call.1} parent=0 // pred_fallthru
    _
  // Predicated region
  $region6: #{tpu_custom_call.1} parent=0 // pred_check
    _
  $region7: #{tpu_custom_call.1} parent=0 // pred_check_branch
    %13 = sbr.rel (0) target = $region9
  $region8: #{tpu_custom_call.1} parent=0 // pred_region
    _
  $region9: #{tpu_custom_call.1} parent=0 // pred_fallthru
    _
  // Predicated region
  $region10: #{tpu_custom_call.1} parent=0 // pred_check
    _
  $region11: #{tpu_custom_call.1} parent=0 // pred_check_branch
    %15 = sbr.rel (0) target = $region13
  $region12: #{tpu_custom_call.1} parent=0 // pred_region
    _
  $region13: #{tpu_custom_call.1} parent=0 // pred_fallthru
    _
  // Predicated region
  $region14: #{tpu_custom_call.1} parent=0 // pred_check
    _
  $region15: #{tpu_custom_call.1} parent=0 // pred_check_branch
    %17 = sbr.rel (0) target = $region17
  $region16: #{tpu_custom_call.1} parent=0 // pred_region
    _
  $region17: #{tpu_custom_call.1} parent=0 // pred_fallthru
    _
  // Predicated region
  $region18: #{tpu_custom_call.1} parent=0 // pred_check
    _
  $region19: #{tpu_custom_call.1} parent=0 // pred_check_branch
    %19 = sbr.rel (0) target = $region21
  $region20: #{tpu_custom_call.1} parent=0 // pred_region
    _
  $region21: #{tpu_custom_call.1} parent=0 // pred_fallthru
    _
  %v21 = vld [vmem:[%s0] sm:$0xff]
  %v22 = vpack.c.bf16 %v21, %v21
  %v23 = vld [vmem:[%s1] sm:$0xf]
  %v24 = vld [vmem:[%s1 + $0x4] sm:$0xf]
  %v25 = vld [vmem:[%s2] sm:$0x1]
  %v27 = vperm.slane %v25, 0
  %v31 = vunpack.c.l.b16 %v23
  %v32 = vunpack.c.l.b16 %v24
  %v33 = vpack.c.b16 %v32, %v31
  %vm35 = vcmask 130048
  %v37 = vsel %vm35, %v22, 0
  %39 = vmatpush.bf16.msra.mxu0 0
  %40 = vmatpush.bf16.msra.mxu0 0
  %41 = vmatpush.bf16.msra.mxu0 0
  %42 = vmatpush.bf16.msra.mxu0 0
  %43 = vmatpush.bf16.msra.mxu0 0
  %44 = vmatpush.bf16.msra.mxu0 0
  %45 = vmatpush.bf16.msra.mxu0 0
  %46 = vmatpush.bf16.msra.mxu0 %v33
  %47 = vmatmul.bf16.gmra.mxu0 %v37
  %v48 = vpop.f32.mrf.mxu0
  %v49 = vadd.f32 %v27, %v48
  %v50 = vpop.f32.mrf.mxu0
  %51 = vdwg.mxu0
  %v52 = vmax.f32 %v49, 0.0
  %v53 = vpack.c.bf16 %v52, %v52
  %v54 = vld [vmem:[%s3] sm:$0xf]
  %v55 = vld [vmem:[%s3 + $0x4] sm:$0xf]
  %v56 = vld [vmem:[%s3 + $0x8] sm:$0xf]
  %v57 = vld [vmem:[%s3 + $0xc] sm:$0xf]
  %v58 = vld [vmem:[%s3 + $0x10] sm:$0xf]
  %v59 = vld [vmem:[%s3 + $0x14] sm:$0xf]
  %v60 = vld [vmem:[%s3 + $0x18] sm:$0xf]
  %v61 = vld [vmem:[%s3 + $0x1c] sm:$0xf]
  %v62 = vld [vmem:[%s3 + $0x20] sm:$0xf]
  %v63 = vld [vmem:[%s3 + $0x24] sm:$0xf]
  %v64 = vld [vmem:[%s3 + $0x28] sm:$0xf]
  %v65 = vld [vmem:[%s3 + $0x2c] sm:$0xf]
  %v66 = vld [vmem:[%s3 + $0x30] sm:$0xf]
  %v67 = vld [vmem:[%s3 + $0x34] sm:$0xf]
  %v68 = vld [vmem:[%s3 + $0x38] sm:$0xf]
  %v69 = vld [vmem:[%s3 + $0x3c] sm:$0xf]
  %v70 = vld [vmem:[%s4] sm:$0x1]
  %v72 = vperm.slane %v70, 0
  %v90 = vunpack.c.l.b16 %v54
  %v91 = vunpack.c.l.b16 %v55
  %v92 = vunpack.c.l.b16 %v56
  %v93 = vunpack.c.l.b16 %v57
  %v94 = vunpack.c.l.b16 %v58
  %v95 = vunpack.c.l.b16 %v59
  %v96 = vunpack.c.l.b16 %v60
  %v97 = vunpack.c.l.b16 %v61
  %v98 = vunpack.c.l.b16 %v62
  %v99 = vunpack.c.l.b16 %v63
  %v100 = vunpack.c.l.b16 %v64
  %v101 = vunpack.c.l.b16 %v65
  %v102 = vunpack.c.l.b16 %v66
  %v103 = vunpack.c.l.b16 %v67
  %v104 = vunpack.c.l.b16 %v68
  %v105 = vunpack.c.l.b16 %v69
  %v106 = vpack.c.b16 %v91, %v90
  %v107 = vpack.c.b16 %v93, %v92
  %v108 = vpack.c.b16 %v95, %v94
  %v109 = vpack.c.b16 %v97, %v96
  %v110 = vpack.c.b16 %v99, %v98
  %v111 = vpack.c.b16 %v101, %v100
  %v112 = vpack.c.b16 %v103, %v102
  %v113 = vpack.c.b16 %v105, %v104
  %122 = vmatpush.bf16.msra.mxu0 %v113
  %123 = vmatpush.bf16.msra.mxu0 %v112
  %124 = vmatpush.bf16.msra.mxu0 %v111
  %125 = vmatpush.bf16.msra.mxu0 %v110
  %126 = vmatpush.bf16.msra.mxu0 %v109
  %127 = vmatpush.bf16.msra.mxu0 %v108
  %128 = vmatpush.bf16.msra.mxu0 %v107
  %129 = vmatpush.bf16.msra.mxu0 %v106
  %130 = vmatmul.bf16.gmra.mxu0 %v53
  %v131 = vpop.f32.mrf.mxu0
  %v132 = vadd.f32 %v72, %v131
  %v133 = vpop.f32.mrf.mxu0
  %134 = vdwg.mxu0
  %vm135 = vcmask 31744
  %136 = vst.msk [vmem:[%s5] sm:$0xff] %vm135, %v132
  // Predicated region
  $region22: #{tpu_custom_call.1} parent=0 // pred_check
    _
  $region23: #{tpu_custom_call.1} parent=0 // pred_check_branch
    %138 = sbr.rel (0) target = $region25
  $region24: #{tpu_custom_call.1} parent=0 // pred_region
    _
  $region25: #{tpu_custom_call.1} parent=0 // pred_fallthru
    _
  // Predicated region
  $region26: #{tpu_custom_call.1} parent=0 // pred_check
    _
  $region27: #{tpu_custom_call.1} parent=0 // pred_check_branch
    %140 = sbr.rel (0) target = $region29
  $region28: #{tpu_custom_call.1} parent=0 // pred_region
    _
  $region29: #{tpu_custom_call.1} parent=0 // pred_fallthru
    _

</llo_original>
